<compile_context>
chip_gen: v7x
topology: tpu7x:2x2x1
jax: 0.10.0
libtpu: 0.0.40
codegen_flags: <defaults>
</compile_context>

<pallas_src>
import functools

import jax
import jax.numpy as jnp
from jax.experimental import pallas as pl
from jax.experimental.pallas import tpu as pltpu


_INV_SQRT2 = 0.7071067811865476


def _gelu_exact(x):
    # Matches PyTorch nn.GELU() default (erf-based, NOT the tanh approximation).
    return 0.5 * x * (1.0 + jax.lax.erf(x * jnp.float32(_INV_SQRT2)))


def _round_up(x, m):
    return (x + m - 1) // m * m


# ----------------------------------------------------------------------------
# Fused classifier-head kernels (1-D batch grid; weights resident in VMEM).
# ----------------------------------------------------------------------------
def _head_kernel_drug(cls_ref, drug_ref, w1_ref, bw_ref, b2_ref, out_ref, *, hidden):
    x = cls_ref[...].astype(jnp.float32)        # [TM, H]  emb_dropout: identity (eval)
    d = drug_ref[...].astype(jnp.float32)       # [TM, F]
    gx = _gelu_exact(x)                         # classifier GELU acts on concat([cls, drug])
    gd = _gelu_exact(d)
    mm_dtype = w1_ref.dtype                     # bf16 weights -> bf16 MXU inputs, f32 accum
    h = jnp.dot(gx.astype(mm_dtype), w1_ref[:hidden, :],
                preferred_element_type=jnp.float32)
    h = h + jnp.dot(gd.astype(mm_dtype), w1_ref[hidden:, :],
                    preferred_element_type=jnp.float32)
    h = h + bw_ref[0:1, :]                      # b1 (f32)
    h = _gelu_exact(h)                          # Dropout (eval) -> GELU
    # Linear(H, 1): VPU multiply + lane reduction instead of an N=1 MXU matmul.
    w2 = bw_ref[1:2, :]                         # [1, H] (f32)
    out = jnp.sum(h * w2, axis=-1, keepdims=True) + b2_ref[0, 0]
    out_ref[...] = out.astype(out_ref.dtype)    # [TM, 1]


def _head_kernel_nodrug(cls_ref, w1_ref, bw_ref, b2_ref, out_ref):
    x = cls_ref[...].astype(jnp.float32)
    gx = _gelu_exact(x)
    mm_dtype = w1_ref.dtype
    h = jnp.dot(gx.astype(mm_dtype), w1_ref[...],
                preferred_element_type=jnp.float32)
    h = h + bw_ref[0:1, :]
    h = _gelu_exact(h)
    w2 = bw_ref[1:2, :]
    out = jnp.sum(h * w2, axis=-1, keepdims=True) + b2_ref[0, 0]
    out_ref[...] = out.astype(out_ref.dtype)


_SMEM_SPEC = pl.BlockSpec(memory_space=pltpu.MemorySpace.SMEM)


def classifier_head_pallas(cls_emb, drug_features, w1_packed, bw_packed, b2):
    """cls_emb [B, H]; drug_features [B, F] or None; w1_packed [H(+F), H] bf16;
    bw_packed [2, H] f32 (row0 = b1, row1 = Linear(H,1) weight); b2 [1,1] f32."""
    B, H = cls_emb.shape
    # Batch tile: multiple of 8, cap at 256 (fills a 256-row MXU on v6e/v7x).
    TM = 256 if B >= 256 else max(8, _round_up(B, 8))
    B_pad = _round_up(B, TM)
    if B_pad != B:
        cls_emb = jnp.pad(cls_emb, ((0, B_pad - B), (0, 0)))
        if drug_features is not None:
            drug_features = jnp.pad(drug_features, ((0, B_pad - B), (0, 0)))
    grid = (B_pad // TM,)
    out_shape = jax.ShapeDtypeStruct((B_pad, 1), jnp.float32)
    compiler_params = pltpu.CompilerParams(dimension_semantics=("parallel",))

    if drug_features is None:
        out = pl.pallas_call(
            _head_kernel_nodrug,
            grid=grid,
            out_shape=out_shape,
            in_specs=[
                pl.BlockSpec((TM, H), lambda i: (i, 0)),            # cls (batch-tiled)
                pl.BlockSpec(w1_packed.shape, lambda i: (0, 0)),    # W1 (resident)
                pl.BlockSpec(bw_packed.shape, lambda i: (0, 0)),    # [b1; w2] (resident)
                _SMEM_SPEC,                                         # b2 scalar
            ],
            out_specs=pl.BlockSpec((TM, 1), lambda i: (i, 0)),
            compiler_params=compiler_params,
        )(cls_emb, w1_packed, bw_packed, b2)
    else:
        F = drug_features.shape[1]
        out = pl.pallas_call(
            functools.partial(_head_kernel_drug, hidden=H),
            grid=grid,
            out_shape=out_shape,
            in_specs=[
                pl.BlockSpec((TM, H), lambda i: (i, 0)),            # cls (batch-tiled)
                pl.BlockSpec((TM, F), lambda i: (i, 0)),            # drug (batch-tiled)
                pl.BlockSpec(w1_packed.shape, lambda i: (0, 0)),    # W1 packed (resident)
                pl.BlockSpec(bw_packed.shape, lambda i: (0, 0)),    # [b1; w2] (resident)
                _SMEM_SPEC,                                         # b2 scalar
            ],
            out_specs=pl.BlockSpec((TM, 1), lambda i: (i, 0)),
            compiler_params=compiler_params,
        )(cls_emb, drug_features, w1_packed, bw_packed, b2)
    return out[:B]


# ----------------------------------------------------------------------------
# Jitted end-to-end forward (gather CLS row only + fused head).
# ----------------------------------------------------------------------------
@jax.jit
def _forward(params, inputs, drug_features):
    text_emb, w1_packed, bw_packed, b2 = params
    # Gather ONLY the CLS token row: never materialize [B, S, H].
    cls_emb = jnp.take(text_emb, inputs[:, 0], axis=0)            # [B, H]
    return classifier_head_pallas(cls_emb, drug_features, w1_packed, bw_packed, b2)


# ----------------------------------------------------------------------------
# Module wrapper with deterministic synthetic parameters.
# ----------------------------------------------------------------------------
class BertSimpleClassifierPallas:
    def __init__(self, key, *, hidden=128, drug_features_size=16, vocab=64,
                 param_dtype=jnp.bfloat16):
        self.hidden = hidden
        self.drug_features_size = drug_features_size

        ks = jax.random.split(key, 3)
        s = 0.02
        # Stub "encoder" embedding table (stand-in for BERT last_hidden_state[:,0,:]).
        self.text_emb = (s * jax.random.normal(ks[0], (vocab, hidden))).astype(jnp.float32)

        in_size = hidden + (drug_features_size if drug_features_size is not None else 0)
        # NOTE: built directly as [in, out]; a real PyTorch checkpoint ([out, in]) must
        # be transposed before packing/splitting along the input dimension.
        w1 = s * jax.random.normal(ks[1], (in_size, hidden))       # Linear(in_size, H)
        self.w1_packed = w1.astype(param_dtype)                    # [H(+F), H] bf16
        b1 = jnp.zeros((hidden,), jnp.float32)
        w2 = (s * jax.random.normal(ks[2], (hidden,))).astype(jnp.float32)
        self.bw_packed = jnp.stack([b1, w2], axis=0)               # [2, H] f32
        self.b2 = jnp.zeros((1, 1), jnp.float32)

    def __call__(self, inputs, attention_mask, drug_features=None):
        # attention_mask is consumed only by the external (stubbed) BERT encoder.
        del attention_mask
        if self.drug_features_size is None:
            drug_features = None
        else:
            assert drug_features is not None, "drug_features required"
        params = (self.text_emb, self.w1_packed, self.bw_packed, self.b2)
        return _forward(params, inputs, drug_features)             # [B, 1] f32

    # Pure-JAX reference (same parameters) for a sanity check.
    def reference(self, inputs, drug_features=None):
        cls = jnp.take(self.text_emb, inputs[:, 0], axis=0).astype(jnp.float32)
        if self.drug_features_size is not None:
            x = jnp.concatenate([cls, drug_features.astype(jnp.float32)], axis=1)
        else:
            x = cls
        h = _gelu_exact(x) @ self.w1_packed.astype(jnp.float32) + self.bw_packed[0]
        h = _gelu_exact(h)
        return (h @ self.bw_packed[1][:, None]) + self.b2[0, 0]


if __name__ == "__main__":
    key = jax.random.PRNGKey(0)
    kp, k_tok, k_drug = jax.random.split(key, 3)

    B, S, H, F = 2, 8, 128, 16
    model = BertSimpleClassifierPallas(kp, hidden=H, drug_features_size=F, vocab=64)

    inputs = jax.random.randint(k_tok, (B, S), 0, 64)
    attention_mask = jnp.ones((B, S), jnp.int32)
    drug_features = jax.random.normal(k_drug, (B, F), jnp.float32)

    proba = model(inputs, attention_mask, drug_features)
    jax.block_until_ready(proba)
    assert proba.shape == (B, 1) and proba.dtype == jnp.float32

    ref = model.reference(inputs, drug_features)
    assert jnp.allclose(proba, ref, rtol=5e-2, atol=1e-3), (proba, ref)

    print("KERNEL_OK")
</pallas_src>

<mosaic_0001>
module attributes {stable_mosaic.version = 11 : i64} {
  func.func @_head_kernel_drug(%arg0: i32, %arg1: memref<8x128xf32, #tpu.memory_space<vmem>>, %arg2: memref<8x16xf32, #tpu.memory_space<vmem>>, %arg3: memref<144x128xbf16, #tpu.memory_space<vmem>>, %arg4: memref<2x128xf32, #tpu.memory_space<vmem>>, %arg5: memref<1x1xf32, #tpu.memory_space<smem>>, %arg6: memref<8x1xf32, #tpu.memory_space<vmem>>) attributes {dimension_semantics = [#tpu.dimension_semantics<parallel>], iteration_bounds = array<i64: 1>, scalar_prefetch = 0 : i64, scratch_operands = 0 : i64, tpu.core_type = #tpu.core_type<tc>, window_params = [{transform_indices = @transform_0, window_bounds = array<i64: 8, 128>}, {transform_indices = @transform_1, window_bounds = array<i64: 8, 16>}, {pipeline_mode = #tpu.pipeline_mode<synchronous>, transform_indices = @transform_2, window_bounds = array<i64: 144, 128>}, {pipeline_mode = #tpu.pipeline_mode<synchronous>, transform_indices = @transform_3, window_bounds = array<i64: 2, 128>}, {transform_indices = @transform_4, window_bounds = array<i64: 1, 1>}, {transform_indices = @transform_5, window_bounds = array<i64: 8, 1>}]} {
    %c0 = arith.constant 0 : index
    %c0_0 = arith.constant 0 : index
    %0 = vector.load %arg1[%c0, %c0_0] : memref<8x128xf32, #tpu.memory_space<vmem>>, vector<8x128xf32>
    %c0_1 = arith.constant 0 : index
    %c0_2 = arith.constant 0 : index
    %1 = vector.load %arg2[%c0_1, %c0_2] : memref<8x16xf32, #tpu.memory_space<vmem>>, vector<8x16xf32>
    %cst = arith.constant 5.000000e-01 : f32
    %2 = vector.broadcast %cst : f32 to vector<8x128xf32>
    %3 = arith.mulf %2, %0 : vector<8x128xf32>
    %cst_3 = arith.constant 0.707106769 : f32
    %4 = vector.broadcast %cst_3 : f32 to vector<8x128xf32>
    %5 = arith.mulf %0, %4 : vector<8x128xf32>
    %6 = math.erf %5 : vector<8x128xf32>
    %cst_4 = arith.constant 1.000000e+00 : f32
    %7 = vector.broadcast %cst_4 : f32 to vector<8x128xf32>
    %8 = arith.addf %7, %6 : vector<8x128xf32>
    %9 = arith.mulf %3, %8 : vector<8x128xf32>
    %cst_5 = arith.constant 5.000000e-01 : f32
    %10 = vector.broadcast %cst_5 : f32 to vector<8x16xf32>
    %11 = arith.mulf %10, %1 : vector<8x16xf32>
    %cst_6 = arith.constant 0.707106769 : f32
    %12 = vector.broadcast %cst_6 : f32 to vector<8x16xf32>
    %13 = arith.mulf %1, %12 : vector<8x16xf32>
    %14 = math.erf %13 : vector<8x16xf32>
    %cst_7 = arith.constant 1.000000e+00 : f32
    %15 = vector.broadcast %cst_7 : f32 to vector<8x16xf32>
    %16 = arith.addf %15, %14 : vector<8x16xf32>
    %17 = arith.mulf %11, %16 : vector<8x16xf32>
    %18 = arith.truncf %9 : vector<8x128xf32> to vector<8x128xbf16>
    %c0_8 = arith.constant 0 : index
    %c0_9 = arith.constant 0 : index
    %19 = vector.load %arg3[%c0_8, %c0_9] : memref<144x128xbf16, #tpu.memory_space<vmem>>, vector<128x128xbf16>
    %cst_10 = arith.constant dense<0.000000e+00> : vector<8x128xf32>
    %20 = tpu.matmul %18, %19, %cst_10 {dimension_numbers = #tpu.dot_dimension_numbers<[1], [0], [0], [1], [0, 0, 1, 1], [], []>} : vector<8x128xbf16>, vector<128x128xbf16>, vector<8x128xf32> -> vector<8x128xf32>
    %21 = arith.truncf %17 : vector<8x16xf32> to vector<8x16xbf16>
    %c128 = arith.constant 128 : index
    %c0_11 = arith.constant 0 : index
    %22 = vector.load %arg3[%c128, %c0_11] : memref<144x128xbf16, #tpu.memory_space<vmem>>, vector<16x128xbf16>
    %cst_12 = arith.constant dense<0.000000e+00> : vector<8x128xf32>
    %23 = tpu.matmul %21, %22, %cst_12 {dimension_numbers = #tpu.dot_dimension_numbers<[1], [0], [0], [1], [0, 0, 1, 1], [], []>} : vector<8x16xbf16>, vector<16x128xbf16>, vector<8x128xf32> -> vector<8x128xf32>
    %24 = arith.addf %20, %23 : vector<8x128xf32>
    %c0_13 = arith.constant 0 : index
    %c0_14 = arith.constant 0 : index
    %25 = vector.load %arg4[%c0_13, %c0_14] : memref<2x128xf32, #tpu.memory_space<vmem>>, vector<1x128xf32>
    %26 = vector.broadcast %25 : vector<1x128xf32> to vector<8x128xf32>
    %27 = arith.addf %24, %26 : vector<8x128xf32>
    %cst_15 = arith.constant 5.000000e-01 : f32
    %28 = vector.broadcast %cst_15 : f32 to vector<8x128xf32>
    %29 = arith.mulf %28, %27 : vector<8x128xf32>
    %cst_16 = arith.constant 0.707106769 : f32
    %30 = vector.broadcast %cst_16 : f32 to vector<8x128xf32>
    %31 = arith.mulf %27, %30 : vector<8x128xf32>
    %32 = math.erf %31 : vector<8x128xf32>
    %cst_17 = arith.constant 1.000000e+00 : f32
    %33 = vector.broadcast %cst_17 : f32 to vector<8x128xf32>
    %34 = arith.addf %33, %32 : vector<8x128xf32>
    %35 = arith.mulf %29, %34 : vector<8x128xf32>
    %c1 = arith.constant 1 : index
    %c0_18 = arith.constant 0 : index
    %36 = vector.load %arg4[%c1, %c0_18] : memref<2x128xf32, #tpu.memory_space<vmem>>, vector<1x128xf32>
    %37 = vector.broadcast %36 : vector<1x128xf32> to vector<8x128xf32>
    %38 = arith.mulf %35, %37 : vector<8x128xf32>
    %cst_19 = arith.constant dense<0.000000e+00> : vector<8xf32>
    %39 = vector.multi_reduction <add>, %38, %cst_19 [1] : vector<8x128xf32> to vector<8xf32>
    %40 = vector.shape_cast %39 : vector<8xf32> to vector<8x1xf32>
    %c0_20 = arith.constant 0 : index
    %c0_21 = arith.constant 0 : index
    %41 = memref.load %arg5[%c0_20, %c0_21] : memref<1x1xf32, #tpu.memory_space<smem>>
    %42 = vector.broadcast %41 : f32 to vector<8x1xf32>
    %43 = arith.addf %40, %42 : vector<8x1xf32>
    %c0_22 = arith.constant 0 : index
    %c0_23 = arith.constant 0 : index
    %44 = vector.load %arg6[%c0_22, %c0_23] : memref<8x1xf32, #tpu.memory_space<vmem>>, vector<8x1xf32>
    tpu.vector_store %arg6[%c0_22, %c0_23], %43 {strides = array<i32>} : memref<8x1xf32, #tpu.memory_space<vmem>>, vector<8x1xf32>,
    return
  }
  func.func @transform_0(%arg0: i32) -> (i32, i32) {
    %c0_i32 = arith.constant 0 : i32
    %c0_i32_0 = arith.constant 0 : i32
    return %arg0, %c0_i32 : i32, i32
  }
  func.func @transform_1(%arg0: i32) -> (i32, i32) {
    %c0_i32 = arith.constant 0 : i32
    %c0_i32_0 = arith.constant 0 : i32
    return %arg0, %c0_i32 : i32, i32
  }
  func.func @transform_2(%arg0: i32) -> (i32, i32) {
    %c0_i32 = arith.constant 0 : i32
    %c0_i32_0 = arith.constant 0 : i32
    %c0_i32_1 = arith.constant 0 : i32
    return %c0_i32, %c0_i32_0 : i32, i32
  }
  func.func @transform_3(%arg0: i32) -> (i32, i32) {
    %c0_i32 = arith.constant 0 : i32
    %c0_i32_0 = arith.constant 0 : i32
    %c0_i32_1 = arith.constant 0 : i32
    return %c0_i32, %c0_i32_0 : i32, i32
  }
  func.func @transform_4(%arg0: i32) -> (i32, i32) {
    %c0_i32 = arith.constant 0 : i32
    %c0_i32_0 = arith.constant 0 : i32
    %c0_i32_1 = arith.constant 0 : i32
    return %c0_i32, %c0_i32_0 : i32, i32
  }
  func.func @transform_5(%arg0: i32) -> (i32, i32) {
    %c0_i32 = arith.constant 0 : i32
    %c0_i32_0 = arith.constant 0 : i32
    return %arg0, %c0_i32 : i32, i32
  }
}

</mosaic_0001>

<llo_original>
// kernel: _forward.1
$region0: #{_forward.1}
  #allocation0 [shape = 'u32[]', space=smem, size = 0x4, offset = 0x4, fixed_abs, tag = 'smem constant byte address 0x4 - core index']
  #allocation1 [shape = 'u32[144,128]{1,0:T(1,128)}', space=vmem, size = 0x12000, scoped, tag = 'internal scratch']
  #allocation2 [shape = 'f32[1,1]{1,0:T(1,128)S(6)}', space=smem, size = 0x200, scoped, tag = 'scoped memory for _forward.1']
  %s0 = inlined_call_operand.vmem [shape: f32[8,128], index: 0, kind: input, shape index: {}]
  %s1 = inlined_call_operand.vmem [shape: f32[8,16], index: 1, kind: input, shape index: {}]
  %s2 = inlined_call_operand.hbm [shape: bf16[144,128], index: 2, kind: input, shape index: {}]
  %s3 = inlined_call_operand.vmem [shape: f32[2,128], index: 3, kind: input, shape index: {}]
  %s4 = inlined_call_operand.<no memory space> [shape: f32[1,1], index: 4, kind: input, shape index: {}]
  %s5 = inlined_call_operand.vmem [shape: f32[8,1], index: 5, kind: output, shape index: {}]
  %s6 = sld [smem:[#allocation0]]
  $region34: #{_forward.1} parent=0
    _
  %s8 = ssub.s32 1, %s6
  %s9 = scalar_select 0, %s8, %s6
  %10 = sst [smem:[#allocation2]] %s4
  $region1: #{_forward.1} parent=0
    #allocation3 [shape = 'u8[36864]{0}', space=vmem, size = 0x9000, scoped, tag = 'input window, operand 2, single buffered']
    #allocation4 [shape = 's32[1]{0}', space=sflag, size = 0x4, scoped, tag = 'scoped memory for _forward.1']
    %11 = vsyncpa [#allocation4], 0
    // Predicated region
    $region2: #{_forward.1} parent=1 // pred_check
      _
    $region3: #{_forward.1} parent=1 // pred_check_branch
      %13 = sbr.rel (0) target = $region5
    $region4: #{_forward.1} parent=1 // pred_region
      _
    $region5: #{_forward.1} parent=1 // pred_fallthru
      _
    // Predicated region
    $region6: #{_forward.1} parent=1 // pred_check
      _
    $region7: #{_forward.1} parent=1 // pred_check_branch
      %15 = sbr.rel (0) target = $region9
    $region8: #{_forward.1} parent=1 // pred_region
      _
    $region9: #{_forward.1} parent=1 // pred_fallthru
      _
    // Predicated region
    $region10: #{_forward.1} parent=1 // pred_check
      _
    $region11: #{_forward.1} parent=1 // pred_check_branch
      %17 = sbr.rel (0) target = $region13
    $region12: #{_forward.1} parent=1 // pred_region
      %s19 = ssub.s32 1152, 1152
      %20 = vsyncadd [#allocation4], %s19
      %s21 = sshll.u32 [#allocation3], 4
      %s22 = int_to_ptr.vmem [resolvable:$true] %s21
      %27 = dma.hbm_to_vmem [thread:$0]  %s2, 1152, %s22, [#allocation4], 64, 64, 4
    $region13: #{_forward.1} parent=1 // pred_fallthru
      _
    // Predicated region
    $region14: #{_forward.1} parent=1 // pred_check
      _
    $region15: #{_forward.1} parent=1 // pred_check_branch
      %29 = sbr.rel (0) target = $region17
    $region16: #{_forward.1} parent=1 // pred_region
      _
    $region17: #{_forward.1} parent=1 // pred_fallthru
      _
    // Predicated region
    $region18: #{_forward.1} parent=1 // pred_check
      _
    $region19: #{_forward.1} parent=1 // pred_check_branch
      %31 = sbr.rel (0) target = $region21
    $region20: #{_forward.1} parent=1 // pred_region
      _
    $region21: #{_forward.1} parent=1 // pred_fallthru
      _
    // Predicated region
    $region22: #{_forward.1} parent=1 // pred_check
      _
    $region23: #{_forward.1} parent=1 // pred_check_branch
      %33 = sbr.rel (0) target = $region25
    $region24: #{_forward.1} parent=1 // pred_region
      %34 = dma.done [#allocation4], 1152
    $region25: #{_forward.1} parent=1 // pred_fallthru
      _
    %v36 = vld [vmem:[%s0] sm:$0xff]
    %v37 = vld [vmem:[%s1] sm:$0xff]
    %v38 = vmul.f32 %v36, 0.5
    %v39 = vmul.f32 %v36, 0.70710677
    %v40 = verf.f32.pop %v39
    %v41 = vadd.f32 %v40, 1.0
    %v42 = vmul.f32 %v38, %v41
    %v43 = vmul.f32 %v37, 0.5
    %v44 = vmul.f32 %v37, 0.70710677
    %v45 = verf.f32.pop %v44
    %v46 = vadd.f32 %v45, 1.0
    %v47 = vmul.f32 %v43, %v46
    %v48 = vpack.c.bf16 %v42, %v42
    %v49 = vld [vmem:[#allocation3] sm:$0xf]
    %v50 = vld [vmem:[#allocation3 + $0x4] sm:$0xf]
    %v51 = vld [vmem:[#allocation3 + $0x8] sm:$0xf]
    %v52 = vld [vmem:[#allocation3 + $0xc] sm:$0xf]
    %v53 = vld [vmem:[#allocation3 + $0x10] sm:$0xf]
    %v54 = vld [vmem:[#allocation3 + $0x14] sm:$0xf]
    %v55 = vld [vmem:[#allocation3 + $0x18] sm:$0xf]
    %v56 = vld [vmem:[#allocation3 + $0x1c] sm:$0xf]
    %v57 = vld [vmem:[#allocation3 + $0x20] sm:$0xf]
    %v58 = vld [vmem:[#allocation3 + $0x24] sm:$0xf]
    %v59 = vld [vmem:[#allocation3 + $0x28] sm:$0xf]
    %v60 = vld [vmem:[#allocation3 + $0x2c] sm:$0xf]
    %v61 = vld [vmem:[#allocation3 + $0x30] sm:$0xf]
    %v62 = vld [vmem:[#allocation3 + $0x34] sm:$0xf]
    %v63 = vld [vmem:[#allocation3 + $0x38] sm:$0xf]
    %v64 = vld [vmem:[#allocation3 + $0x3c] sm:$0xf]
    %v65 = vpack.c.bf16 %v47, %v47
    %v66 = vld [vmem:[#allocation3 + $0x40] sm:$0xf]
    %v67 = vld [vmem:[#allocation3 + $0x44] sm:$0xf]
    %v70 = vunpack.c.l.b16 %v66
    %v71 = vunpack.c.l.b16 %v67
    %v72 = vpack.c.b16 %v71, %v70
    %vm74 = vcmask 130048
    %v76 = vsel %vm74, %v65, 0
    %78 = vmatprep.subr.bf16.mxu0 0
    %79 = vmatpush1.bf16.msra.mxu0 %v72
    %80 = vmatprep.subr.bf16.mxu0 0
    %81 = vmatpush1.bf16.msra.mxu0 0
    %82 = vmatprep.subr.bf16.mxu0 0
    %83 = vmatpush1.bf16.msra.mxu0 0
    %84 = vmatprep.subr.bf16.mxu0 0
    %85 = vmatpush1.bf16.msra.mxu0 0
    %86 = vmatprep.subr.bf16.mxu0 0
    %87 = vmatpush1.bf16.msra.mxu0 0
    %88 = vmatprep.subr.bf16.mxu0 0
    %89 = vmatpush1.bf16.msra.mxu0 0
    %90 = vmatprep.subr.bf16.mxu0 0
    %91 = vmatpush1.bf16.msra.mxu0 0
    %92 = vmatprep.subr.bf16.mxu0 0
    %93 = vmatpush1.bf16.msra.mxu0 0
    %94 = vmatprep.subr.bf16.mxu0 0
    %95 = vmatpush1.bf16.msra.mxu0 0
    %96 = vmatprep.subr.bf16.mxu0 0
    %97 = vmatpush1.bf16.msra.mxu0 0
    %98 = vmatprep.subr.bf16.mxu0 0
    %99 = vmatpush1.bf16.msra.mxu0 0
    %100 = vmatprep.subr.bf16.mxu0 0
    %101 = vmatpush1.bf16.msra.mxu0 0
    %102 = vmatprep.subr.bf16.mxu0 0
    %103 = vmatpush1.bf16.msra.mxu0 0
    %104 = vmatprep.subr.bf16.mxu0 0
    %105 = vmatpush1.bf16.msra.mxu0 0
    %106 = vmatprep.subr.bf16.mxu0 0
    %107 = vmatpush1.bf16.msra.mxu0 0
    %108 = vmatprep.subr.bf16.mxu0 0
    %109 = vmatpush1.bf16.msra.mxu0 0
    %110 = vmatprep.mubr.bf16.mxu0 0
    %111 = vmatmul.mubr.bf16.gmra.mrb[0].mxu0 %v76
    %v112 = vpop.f32.mrb[0].mxu0
    %v113 = vadd.f32 0.0, %v112
    %v114 = vpop.f32.mrb[0].mxu0
    %v115 = vpop.f32.mrb[0].mxu0
    %v116 = vpop.f32.mrb[0].mxu0
    %117 = vdwg.mxu0
    %v134 = vunpack.c.l.b16 %v49
    %v135 = vunpack.c.l.b16 %v50
    %v136 = vunpack.c.l.b16 %v51
    %v137 = vunpack.c.l.b16 %v52
    %v138 = vunpack.c.l.b16 %v53
    %v139 = vunpack.c.l.b16 %v54
    %v140 = vunpack.c.l.b16 %v55
    %v141 = vunpack.c.l.b16 %v56
    %v142 = vunpack.c.l.b16 %v57
    %v143 = vunpack.c.l.b16 %v58
    %v144 = vunpack.c.l.b16 %v59
    %v145 = vunpack.c.l.b16 %v60
    %v146 = vunpack.c.l.b16 %v61
    %v147 = vunpack.c.l.b16 %v62
    %v148 = vunpack.c.l.b16 %v63
    %v149 = vunpack.c.l.b16 %v64
    %v150 = vpack.c.b16 %v135, %v134
    %v151 = vpack.c.b16 %v137, %v136
    %v152 = vpack.c.b16 %v139, %v138
    %v153 = vpack.c.b16 %v141, %v140
    %v154 = vpack.c.b16 %v143, %v142
    %v155 = vpack.c.b16 %v145, %v144
    %v156 = vpack.c.b16 %v147, %v146
    %v157 = vpack.c.b16 %v149, %v148
    %166 = vmatprep.subr.bf16.mxu0 0
    %167 = vmatpush1.bf16.msra.mxu0 %v150
    %168 = vmatprep.subr.bf16.mxu0 0
    %169 = vmatpush1.bf16.msra.mxu0 %v151
    %170 = vmatprep.subr.bf16.mxu0 0
    %171 = vmatpush1.bf16.msra.mxu0 %v152
    %172 = vmatprep.subr.bf16.mxu0 0
    %173 = vmatpush1.bf16.msra.mxu0 %v153
    %174 = vmatprep.subr.bf16.mxu0 0
    %175 = vmatpush1.bf16.msra.mxu0 %v154
    %176 = vmatprep.subr.bf16.mxu0 0
    %177 = vmatpush1.bf16.msra.mxu0 %v155
    %178 = vmatprep.subr.bf16.mxu0 0
    %179 = vmatpush1.bf16.msra.mxu0 %v156
    %180 = vmatprep.subr.bf16.mxu0 0
    %181 = vmatpush1.bf16.msra.mxu0 %v157
    %182 = vmatprep.subr.bf16.mxu0 0
    %183 = vmatpush1.bf16.msra.mxu0 0
    %184 = vmatprep.subr.bf16.mxu0 0
    %185 = vmatpush1.bf16.msra.mxu0 0
    %186 = vmatprep.subr.bf16.mxu0 0
    %187 = vmatpush1.bf16.msra.mxu0 0
    %188 = vmatprep.subr.bf16.mxu0 0
    %189 = vmatpush1.bf16.msra.mxu0 0
    %190 = vmatprep.subr.bf16.mxu0 0
    %191 = vmatpush1.bf16.msra.mxu0 0
    %192 = vmatprep.subr.bf16.mxu0 0
    %193 = vmatpush1.bf16.msra.mxu0 0
    %194 = vmatprep.subr.bf16.mxu0 0
    %195 = vmatpush1.bf16.msra.mxu0 0
    %196 = vmatprep.subr.bf16.mxu0 0
    %197 = vmatpush1.bf16.msra.mxu0 0
    %198 = vmatprep.mubr.bf16.mxu0 0
    %199 = vmatmul.mubr.bf16.gmra.mrb[0].mxu0 %v48
    %v200 = vpop.f32.mrb[0].mxu0
    %v201 = vadd.f32 %v113, %v200
    %v202 = vpop.f32.mrb[0].mxu0
    %v203 = vpop.f32.mrb[0].mxu0
    %v204 = vpop.f32.mrb[0].mxu0
    %205 = vdwg.mxu0
    %v206 = vld [vmem:[%s3] sm:$0x1]
    %v207 = vlaneseq
    %v208 = vshrl.u32 %v207, 7
    %v209 = vsub.s32 0, %v208
    %v210 = vrot.slane %v206, %v209
    %v211 = vadd.f32 %v201, %v210
    %v212 = vmul.f32 %v211, 0.5
    %v213 = vmul.f32 %v211, 0.70710677
    %v214 = verf.f32.pop %v213
    %v215 = vadd.f32 %v214, 1.0
    %v216 = vmul.f32 %v212, %v215
    %v217 = vld [vmem:[%s3 + $0x1] sm:$0x1]
    %v218 = vlaneseq
    %v219 = vshrl.u32 %v218, 7
    %v220 = vsub.s32 0, %v219
    %v221 = vrot.slane %v217, %v220
    %v222 = vmul.f32 %v216, %v221
    %223 = vadd.xlane.f32.xlu0 %v222
    %v224 = vpop.xlane.xlu0 %223
    %s225 = sld [smem:[#allocation2]]
    %v226 = vstv %s225
    %v227 = vadd.f32 %v224, %v226
    %vm228 = vcmask 7168
    %229 = vst.msk [vmem:[%s5] sm:$0xff] %vm228, %v227
    // Predicated region
    $region26: #{_forward.1} parent=1 // pred_check
      _
    $region27: #{_forward.1} parent=1 // pred_check_branch
      %231 = sbr.rel (0) target = $region29
    $region28: #{_forward.1} parent=1 // pred_region
      _
    $region29: #{_forward.1} parent=1 // pred_fallthru
      _
    // Predicated region
    $region30: #{_forward.1} parent=1 // pred_check
      _
    $region31: #{_forward.1} parent=1 // pred_check_branch
      %233 = sbr.rel (0) target = $region33
    $region32: #{_forward.1} parent=1 // pred_region
      _
    $region33: #{_forward.1} parent=1 // pred_fallthru
      _
    %234 = vsyncpa [#allocation4], 1

</llo_original>
